<compile_context>
chip_gen: v7x
topology: tpu7x:2x2x1
jax: 0.10.0
libtpu: 0.0.40
codegen_flags: <defaults>
</compile_context>

<pallas_src>
import functools

import jax
import jax.numpy as jnp
from jax import lax
from jax.experimental import pallas as pl
from jax.experimental.pallas import tpu as pltpu


# ----------------------------------------------------------------------------
# Kernel
# ----------------------------------------------------------------------------
def _policy_kernel(obs_ref, w1_ref, b1_ref, wh_ref, bh_ref, out_ref,
                   *, num_agents, num_modes):
    # Shared trunk: fc1 + ReLU, computed once per batch tile (bf16 MXU, f32 acc).
    h = jnp.dot(obs_ref[...], w1_ref[...], preferred_element_type=jnp.float32)
    h = jnp.maximum(h + b1_ref[...], 0.0)                       # (tb, hidden) f32

    # All heads fused (and lane-padded to a multiple of 128): one MXU matmul.
    logits = jnp.dot(h.astype(jnp.bfloat16), wh_ref[...],
                     preferred_element_type=jnp.float32) + bh_ref[...]  # (tb, n_pad)

    tb, n_pad = logits.shape
    lane = lax.broadcasted_iota(jnp.int32, (tb, n_pad), 1)

    # Per-agent (per num_modes lane segment) max, broadcast back across the
    # block with cheap selects. Padded lanes have logits == 0 and keep m == 0.
    m_b = jnp.zeros_like(logits)
    for a in range(num_agents):                 # num_agents is small and static
        lo, hi = a * num_modes, (a + 1) * num_modes
        m_a = jnp.max(logits[:, lo:hi], axis=-1, keepdims=True)
        m_b = jnp.where((lane >= lo) & (lane < hi), m_a, m_b)

    # Single EUP pass over the whole padded block (pad lanes -> exp(0) = 1).
    e = jnp.exp(logits - m_b)

    # Per-segment sums broadcast back the same way; pad lanes divide by 1.
    d_b = jnp.ones_like(logits)
    for a in range(num_agents):
        lo, hi = a * num_modes, (a + 1) * num_modes
        s_a = jnp.sum(e[:, lo:hi], axis=-1, keepdims=True)
        d_b = jnp.where((lane >= lo) & (lane < hi), s_a, d_b)

    # Exact division -> probabilities sum to 1 to f32 rounding.
    # Single lane-dense (multiple-of-128) store of the whole tile.
    out_ref[...] = e / d_b


# ----------------------------------------------------------------------------
# Tiling / spec helpers
# ----------------------------------------------------------------------------
def _round_up(x, m):
    return (x + m - 1) // m * m


_VMEM_BUDGET = 24 << 20      # stay well under the 32 MiB scoped-VMEM limit set below


def _pick_batch_tile(B, obs_size, hidden, n_pad):
    """VMEM-aware batch tile:
       * whole (8-padded) batch as one block when small (avoid per-step overhead),
       * >= 2 grid steps once B > 512 so v7x's second TensorCore has work,
       * 256..1024-row tiles for large B (measured HBM-roofline sweet spot),
       * capped so obs/out tiles (double-buffered), resident weights and the
         in-kernel f32 intermediates fit the VMEM budget."""
    # tile-independent weight bytes (assume worst case: double-buffered)
    weight_bytes = 2 * (obs_size * hidden * 2 + hidden * 4
                        + hidden * n_pad * 2 + n_pad * 4)
    # per-row bytes: bf16 obs tile + f32 out tile (x2 buffers each) + f32/bf16
    # intermediates (h, logits, e, m_b, d_b, lane iota)
    per_row = (2 * obs_size * 2) + (2 * n_pad * 4) + hidden * 6 + 6 * n_pad * 4
    cap = max(8, ((_VMEM_BUDGET - weight_bytes) // per_row) // 8 * 8)

    if B <= 512:
        return min(_round_up(B, 8), cap)
    # B > 512: at least two tiles (megacore), each <= 1024 rows, VMEM-capped.
    tb = min(1024, _round_up(pl.cdiv(B, 2), 8), cap)
    return max(8, tb)


def _const_spec(shape):
    """Grid-invariant (weight/bias) block: full array, constant index map, and
    -- where supported -- single-buffered so the pipeline does not allocate a
    useless second VMEM copy."""
    index_map = lambda i: tuple(0 for _ in shape)
    buffered = getattr(pl, "Buffered", None)
    if buffered is not None:
        try:
            return pl.BlockSpec(shape, index_map, pipeline_mode=buffered(1))
        except TypeError:       # older JAX without pipeline_mode on BlockSpec
            pass
    return pl.BlockSpec(shape, index_map)


# ----------------------------------------------------------------------------
# Parameter preparation (done ONCE, hoisted out of the per-call path)
# ----------------------------------------------------------------------------
def fuse_head_params(w1, b1, wh, bh):
    """(A, hidden, M) heads -> one (hidden, round_up(A*M, 128)) bf16 matrix so
    agent a owns lanes [a*M, (a+1)*M); pad columns/biases are zero."""
    num_agents, hidden, num_modes = wh.shape
    fused = num_agents * num_modes
    n_pad = _round_up(fused, 128)

    wh_f = jnp.transpose(wh, (1, 0, 2)).reshape(hidden, fused)
    wh_f = jnp.pad(wh_f, ((0, 0), (0, n_pad - fused)))
    bh_f = jnp.pad(bh.reshape(1, fused), ((0, 0), (0, n_pad - fused)))

    return dict(
        w1=w1.astype(jnp.bfloat16),
        b1=b1.reshape(1, hidden).astype(jnp.float32),
        wh_f=wh_f.astype(jnp.bfloat16),
        bh_f=bh_f.astype(jnp.float32),
        num_agents=int(num_agents),
        num_modes=int(num_modes),
    )


# ----------------------------------------------------------------------------
# Forward
# ----------------------------------------------------------------------------
@functools.partial(jax.jit, static_argnames=("num_agents", "num_modes"))
def _forward_fused(obs, w1, b1, wh_f, bh_f, *, num_agents, num_modes):
    B, obs_size = obs.shape
    hidden = w1.shape[1]
    n_pad = wh_f.shape[1]

    tb = _pick_batch_tile(B, obs_size, hidden, n_pad)
    b_pad = _round_up(B, tb)
    if b_pad != B:
        obs = jnp.pad(obs, ((0, b_pad - B), (0, 0)))      # zero rows, sliced off below
    obs = obs.astype(jnp.bfloat16)

    grid = (b_pad // tb,)
    kernel = functools.partial(_policy_kernel,
                               num_agents=num_agents, num_modes=num_modes)

    out = pl.pallas_call(
        kernel,
        out_shape=jax.ShapeDtypeStruct((b_pad, n_pad), jnp.float32),
        grid_spec=pltpu.PrefetchScalarGridSpec(
            num_scalar_prefetch=0,
            grid=grid,
            in_specs=[
                pl.BlockSpec((tb, obs_size), lambda i: (i, 0)),   # obs (batch-tiled)
                _const_spec((obs_size, hidden)),                  # fc1 weight (bf16)
                _const_spec((1, hidden)),                         # fc1 bias   (f32)
                _const_spec((hidden, n_pad)),                     # fused head weights (bf16)
                _const_spec((1, n_pad)),                          # fused head biases  (f32)
            ],
            out_specs=pl.BlockSpec((tb, n_pad), lambda i: (i, 0)),  # lane-dense output
        ),
        compiler_params=pltpu.CompilerParams(
            dimension_semantics=("parallel",),        # batch tiles -> both TCs on v7x
            vmem_limit_bytes=32 * 1024 * 1024,        # raise v5e default, safe on v7x
        ),
    )(obs, w1, b1, wh_f, bh_f)

    # Drop batch padding + lane padding, split back into per-agent outputs.
    return tuple(out[:B, a * num_modes:(a + 1) * num_modes]
                 for a in range(num_agents))


def multi_head_policy_forward(obs, params):
    """obs: (B, obs_size) or (obs_size,). Returns a list of num_agents arrays of
    shape (B, num_modes) (or (num_modes,) for 1-D obs), softmaxed over modes."""
    squeeze = obs.ndim == 1
    if squeeze:
        obs = obs[None, :]   # softmax(dim=0) on a vector == batched softmax(dim=1), B=1
    outs = _forward_fused(obs, params["w1"], params["b1"],
                          params["wh_f"], params["bh_f"],
                          num_agents=params["num_agents"],
                          num_modes=params["num_modes"])
    if squeeze:
        return [o[0] for o in outs]
    return list(outs)


# ----------------------------------------------------------------------------
# Init + pure-JAX reference
# ----------------------------------------------------------------------------
def init_params(key, obs_size, num_agents, num_modes, hidden_size):
    """Deterministic synthetic init (mimics PyTorch Linear uniform(-1/sqrt(fan_in), ...))."""
    k1, k2, k3, k4, k5, k6 = jax.random.split(key, 6)
    lim1 = 1.0 / jnp.sqrt(obs_size)
    limh = 1.0 / jnp.sqrt(hidden_size)
    w1 = jax.random.uniform(k1, (obs_size, hidden_size), jnp.float32, -lim1, lim1)
    b1 = jax.random.uniform(k2, (hidden_size,), jnp.float32, -lim1, lim1)
    # fc2 params exist in the module but are unused in forward(); allocated for parity.
    w2 = jax.random.uniform(k3, (hidden_size, hidden_size), jnp.float32, -limh, limh)
    b2 = jax.random.uniform(k4, (hidden_size,), jnp.float32, -limh, limh)
    wh = jax.random.uniform(k5, (num_agents, hidden_size, num_modes), jnp.float32, -limh, limh)
    bh = jax.random.uniform(k6, (num_agents, num_modes), jnp.float32, -limh, limh)
    return w1, b1, w2, b2, wh, bh


def reference_forward(obs, w1, b1, wh, bh):
    x = jnp.maximum(obs @ w1 + b1, 0.0)
    outs = []
    for a in range(wh.shape[0]):
        logits = x @ wh[a] + bh[a]
        outs.append(jax.nn.softmax(logits, axis=-1))
    return outs


if __name__ == "__main__":
    obs_size, num_agents, num_modes, hidden_size = 32, 3, 8, 16
    batch = 8

    key = jax.random.PRNGKey(0)
    kp, kx = jax.random.split(key)
    w1, b1, w2, b2, wh, bh = init_params(kp, obs_size, num_agents, num_modes, hidden_size)
    params = fuse_head_params(w1, b1, wh, bh)       # hoisted, done once
    obs = jax.random.normal(kx, (batch, obs_size), jnp.float32)

    # Batched path (softmax over dim=1).
    actions = multi_head_policy_forward(obs, params)
    actions = [jax.block_until_ready(a) for a in actions]

    ref = reference_forward(obs, w1, b1, wh, bh)
    for a, r in zip(actions, ref):
        assert a.shape == (batch, num_modes)
        # bf16 MXU inputs (f32 accumulation) vs f32 reference -> loose value tolerance.
        assert jnp.allclose(a, r, atol=2e-2, rtol=2e-2)
        # Exact softmax division -> rows sum to 1 to f32 rounding.
        assert jnp.allclose(jnp.sum(a, axis=-1), 1.0, atol=1e-5)

    # 1-D obs path (softmax(dim=0) branch) — also exercises batch padding.
    obs1 = obs[0]
    actions1 = multi_head_policy_forward(obs1, params)
    actions1 = [jax.block_until_ready(a) for a in actions1]
    ref1 = reference_forward(obs1[None, :], w1, b1, wh, bh)
    for a, r in zip(actions1, ref1):
        assert a.shape == (num_modes,)
        assert jnp.allclose(a, r[0], atol=2e-2, rtol=2e-2)

    print("KERNEL_OK")
</pallas_src>

<mosaic_0001>
module attributes {stable_mosaic.version = 11 : i64} {
  func.func @_policy_kernel(%arg0: i32, %arg1: memref<8x32xbf16, #tpu.memory_space<vmem>>, %arg2: memref<32x16xbf16, #tpu.memory_space<vmem>>, %arg3: memref<1x16xf32, #tpu.memory_space<vmem>>, %arg4: memref<16x128xbf16, #tpu.memory_space<vmem>>, %arg5: memref<1x128xf32, #tpu.memory_space<vmem>>, %arg6: memref<8x128xf32, #tpu.memory_space<vmem>>) attributes {dimension_semantics = [#tpu.dimension_semantics<parallel>], iteration_bounds = array<i64: 1>, scalar_prefetch = 0 : i64, scratch_operands = 0 : i64, tpu.core_type = #tpu.core_type<tc>, window_params = [{transform_indices = @transform_0, window_bounds = array<i64: 8, 32>}, {pipeline_mode = #tpu.pipeline_mode<synchronous>, transform_indices = @transform_1, window_bounds = array<i64: 32, 16>}, {pipeline_mode = #tpu.pipeline_mode<synchronous>, transform_indices = @transform_2, window_bounds = array<i64: 1, 16>}, {pipeline_mode = #tpu.pipeline_mode<synchronous>, transform_indices = @transform_3, window_bounds = array<i64: 16, 128>}, {pipeline_mode = #tpu.pipeline_mode<synchronous>, transform_indices = @transform_4, window_bounds = array<i64: 1, 128>}, {transform_indices = @transform_5, window_bounds = array<i64: 8, 128>}]} {
    %c0 = arith.constant 0 : index
    %c0_0 = arith.constant 0 : index
    %0 = vector.load %arg1[%c0, %c0_0] : memref<8x32xbf16, #tpu.memory_space<vmem>>, vector<8x32xbf16>
    %c0_1 = arith.constant 0 : index
    %c0_2 = arith.constant 0 : index
    %1 = vector.load %arg2[%c0_1, %c0_2] : memref<32x16xbf16, #tpu.memory_space<vmem>>, vector<32x16xbf16>
    %cst = arith.constant dense<0.000000e+00> : vector<8x16xf32>
    %2 = tpu.matmul %0, %1, %cst {dimension_numbers = #tpu.dot_dimension_numbers<[1], [0], [0], [1], [0, 0, 1, 1], [], []>} : vector<8x32xbf16>, vector<32x16xbf16>, vector<8x16xf32> -> vector<8x16xf32>
    %c0_3 = arith.constant 0 : index
    %c0_4 = arith.constant 0 : index
    %3 = vector.load %arg3[%c0_3, %c0_4] : memref<1x16xf32, #tpu.memory_space<vmem>>, vector<1x16xf32>
    %4 = vector.broadcast %3 : vector<1x16xf32> to vector<8x16xf32>
    %5 = arith.addf %2, %4 : vector<8x16xf32>
    %cst_5 = arith.constant 0.000000e+00 : f32
    %6 = vector.broadcast %cst_5 : f32 to vector<8x16xf32>
    %7 = arith.maximumf %5, %6 : vector<8x16xf32>
    %8 = arith.truncf %7 : vector<8x16xf32> to vector<8x16xbf16>
    %c0_6 = arith.constant 0 : index
    %c0_7 = arith.constant 0 : index
    %9 = vector.load %arg4[%c0_6, %c0_7] : memref<16x128xbf16, #tpu.memory_space<vmem>>, vector<16x128xbf16>
    %cst_8 = arith.constant dense<0.000000e+00> : vector<8x128xf32>
    %10 = tpu.matmul %8, %9, %cst_8 {dimension_numbers = #tpu.dot_dimension_numbers<[1], [0], [0], [1], [0, 0, 1, 1], [], []>} : vector<8x16xbf16>, vector<16x128xbf16>, vector<8x128xf32> -> vector<8x128xf32>
    %c0_9 = arith.constant 0 : index
    %c0_10 = arith.constant 0 : index
    %11 = vector.load %arg5[%c0_9, %c0_10] : memref<1x128xf32, #tpu.memory_space<vmem>>, vector<1x128xf32>
    %12 = vector.broadcast %11 : vector<1x128xf32> to vector<8x128xf32>
    %13 = arith.addf %10, %12 : vector<8x128xf32>
    %14 = tpu.iota {dimensions = array<i32: 1>} : vector<8x128xi32>
    %cst_11 = arith.constant 0.000000e+00 : f32
    %15 = vector.broadcast %cst_11 : f32 to vector<8x128xf32>
    %16 = vector.extract_strided_slice %13 {offsets = [0, 0], sizes = [8, 8], strides = [1, 1]} : vector<8x128xf32> to vector<8x8xf32>
    %cst_12 = arith.constant dense<0xFF800000> : vector<8xf32>
    %17 = vector.multi_reduction <maximumf>, %16, %cst_12 [1] : vector<8x8xf32> to vector<8xf32>
    %18 = vector.shape_cast %17 : vector<8xf32> to vector<8x1xf32>
    %c0_i32 = arith.constant 0 : i32
    %19 = vector.broadcast %c0_i32 : i32 to vector<8x128xi32>
    %20 = arith.cmpi sge, %14, %19 : vector<8x128xi32>
    %c8_i32 = arith.constant 8 : i32
    %21 = vector.broadcast %c8_i32 : i32 to vector<8x128xi32>
    %22 = arith.cmpi slt, %14, %21 : vector<8x128xi32>
    %23 = arith.andi %20, %22 : vector<8x128xi1>
    %24 = vector.shape_cast %18 : vector<8x1xf32> to vector<8x1xf32>
    %25 = vector.broadcast %24 : vector<8x1xf32> to vector<8x128xf32>
    %26 = arith.select %23, %25, %15 : vector<8x128xi1>, vector<8x128xf32>
    %27 = vector.extract_strided_slice %13 {offsets = [0, 8], sizes = [8, 8], strides = [1, 1]} : vector<8x128xf32> to vector<8x8xf32>
    %cst_13 = arith.constant dense<0xFF800000> : vector<8xf32>
    %28 = vector.multi_reduction <maximumf>, %27, %cst_13 [1] : vector<8x8xf32> to vector<8xf32>
    %29 = vector.shape_cast %28 : vector<8xf32> to vector<8x1xf32>
    %c8_i32_14 = arith.constant 8 : i32
    %30 = vector.broadcast %c8_i32_14 : i32 to vector<8x128xi32>
    %31 = arith.cmpi sge, %14, %30 : vector<8x128xi32>
    %c16_i32 = arith.constant 16 : i32
    %32 = vector.broadcast %c16_i32 : i32 to vector<8x128xi32>
    %33 = arith.cmpi slt, %14, %32 : vector<8x128xi32>
    %34 = arith.andi %31, %33 : vector<8x128xi1>
    %35 = vector.shape_cast %29 : vector<8x1xf32> to vector<8x1xf32>
    %36 = vector.broadcast %35 : vector<8x1xf32> to vector<8x128xf32>
    %37 = arith.select %34, %36, %26 : vector<8x128xi1>, vector<8x128xf32>
    %38 = vector.extract_strided_slice %13 {offsets = [0, 16], sizes = [8, 8], strides = [1, 1]} : vector<8x128xf32> to vector<8x8xf32>
    %cst_15 = arith.constant dense<0xFF800000> : vector<8xf32>
    %39 = vector.multi_reduction <maximumf>, %38, %cst_15 [1] : vector<8x8xf32> to vector<8xf32>
    %40 = vector.shape_cast %39 : vector<8xf32> to vector<8x1xf32>
    %c16_i32_16 = arith.constant 16 : i32
    %41 = vector.broadcast %c16_i32_16 : i32 to vector<8x128xi32>
    %42 = arith.cmpi sge, %14, %41 : vector<8x128xi32>
    %c24_i32 = arith.constant 24 : i32
    %43 = vector.broadcast %c24_i32 : i32 to vector<8x128xi32>
    %44 = arith.cmpi slt, %14, %43 : vector<8x128xi32>
    %45 = arith.andi %42, %44 : vector<8x128xi1>
    %46 = vector.shape_cast %40 : vector<8x1xf32> to vector<8x1xf32>
    %47 = vector.broadcast %46 : vector<8x1xf32> to vector<8x128xf32>
    %48 = arith.select %45, %47, %37 : vector<8x128xi1>, vector<8x128xf32>
    %49 = arith.subf %13, %48 : vector<8x128xf32>
    %50 = math.exp %49 : vector<8x128xf32>
    %cst_17 = arith.constant 1.000000e+00 : f32
    %51 = vector.broadcast %cst_17 : f32 to vector<8x128xf32>
    %52 = vector.extract_strided_slice %50 {offsets = [0, 0], sizes = [8, 8], strides = [1, 1]} : vector<8x128xf32> to vector<8x8xf32>
    %cst_18 = arith.constant dense<0.000000e+00> : vector<8xf32>
    %53 = vector.multi_reduction <add>, %52, %cst_18 [1] : vector<8x8xf32> to vector<8xf32>
    %54 = vector.shape_cast %53 : vector<8xf32> to vector<8x1xf32>
    %c0_i32_19 = arith.constant 0 : i32
    %55 = vector.broadcast %c0_i32_19 : i32 to vector<8x128xi32>
    %56 = arith.cmpi sge, %14, %55 : vector<8x128xi32>
    %c8_i32_20 = arith.constant 8 : i32
    %57 = vector.broadcast %c8_i32_20 : i32 to vector<8x128xi32>
    %58 = arith.cmpi slt, %14, %57 : vector<8x128xi32>
    %59 = arith.andi %56, %58 : vector<8x128xi1>
    %60 = vector.shape_cast %54 : vector<8x1xf32> to vector<8x1xf32>
    %61 = vector.broadcast %60 : vector<8x1xf32> to vector<8x128xf32>
    %62 = arith.select %59, %61, %51 : vector<8x128xi1>, vector<8x128xf32>
    %63 = vector.extract_strided_slice %50 {offsets = [0, 8], sizes = [8, 8], strides = [1, 1]} : vector<8x128xf32> to vector<8x8xf32>
    %cst_21 = arith.constant dense<0.000000e+00> : vector<8xf32>
    %64 = vector.multi_reduction <add>, %63, %cst_21 [1] : vector<8x8xf32> to vector<8xf32>
    %65 = vector.shape_cast %64 : vector<8xf32> to vector<8x1xf32>
    %c8_i32_22 = arith.constant 8 : i32
    %66 = vector.broadcast %c8_i32_22 : i32 to vector<8x128xi32>
    %67 = arith.cmpi sge, %14, %66 : vector<8x128xi32>
    %c16_i32_23 = arith.constant 16 : i32
    %68 = vector.broadcast %c16_i32_23 : i32 to vector<8x128xi32>
    %69 = arith.cmpi slt, %14, %68 : vector<8x128xi32>
    %70 = arith.andi %67, %69 : vector<8x128xi1>
    %71 = vector.shape_cast %65 : vector<8x1xf32> to vector<8x1xf32>
    %72 = vector.broadcast %71 : vector<8x1xf32> to vector<8x128xf32>
    %73 = arith.select %70, %72, %62 : vector<8x128xi1>, vector<8x128xf32>
    %74 = vector.extract_strided_slice %50 {offsets = [0, 16], sizes = [8, 8], strides = [1, 1]} : vector<8x128xf32> to vector<8x8xf32>
    %cst_24 = arith.constant dense<0.000000e+00> : vector<8xf32>
    %75 = vector.multi_reduction <add>, %74, %cst_24 [1] : vector<8x8xf32> to vector<8xf32>
    %76 = vector.shape_cast %75 : vector<8xf32> to vector<8x1xf32>
    %c16_i32_25 = arith.constant 16 : i32
    %77 = vector.broadcast %c16_i32_25 : i32 to vector<8x128xi32>
    %78 = arith.cmpi sge, %14, %77 : vector<8x128xi32>
    %c24_i32_26 = arith.constant 24 : i32
    %79 = vector.broadcast %c24_i32_26 : i32 to vector<8x128xi32>
    %80 = arith.cmpi slt, %14, %79 : vector<8x128xi32>
    %81 = arith.andi %78, %80 : vector<8x128xi1>
    %82 = vector.shape_cast %76 : vector<8x1xf32> to vector<8x1xf32>
    %83 = vector.broadcast %82 : vector<8x1xf32> to vector<8x128xf32>
    %84 = arith.select %81, %83, %73 : vector<8x128xi1>, vector<8x128xf32>
    %85 = arith.divf %50, %84 : vector<8x128xf32>
    %c0_27 = arith.constant 0 : index
    %c0_28 = arith.constant 0 : index
    %86 = vector.load %arg6[%c0_27, %c0_28] : memref<8x128xf32, #tpu.memory_space<vmem>>, vector<8x128xf32>
    tpu.vector_store %arg6[%c0_27, %c0_28], %85 {strides = array<i32>} : memref<8x128xf32, #tpu.memory_space<vmem>>, vector<8x128xf32>,
    return
  }
  func.func @transform_0(%arg0: i32) -> (i32, i32) {
    %c0_i32 = arith.constant 0 : i32
    %c0_i32_0 = arith.constant 0 : i32
    return %arg0, %c0_i32 : i32, i32
  }
  func.func @transform_1(%arg0: i32) -> (i32, i32) {
    %c0_i32 = arith.constant 0 : i32
    %c0_i32_0 = arith.constant 0 : i32
    %c0_i32_1 = arith.constant 0 : i32
    return %c0_i32, %c0_i32_0 : i32, i32
  }
  func.func @transform_2(%arg0: i32) -> (i32, i32) {
    %c0_i32 = arith.constant 0 : i32
    %c0_i32_0 = arith.constant 0 : i32
    %c0_i32_1 = arith.constant 0 : i32
    return %c0_i32, %c0_i32_0 : i32, i32
  }
  func.func @transform_3(%arg0: i32) -> (i32, i32) {
    %c0_i32 = arith.constant 0 : i32
    %c0_i32_0 = arith.constant 0 : i32
    %c0_i32_1 = arith.constant 0 : i32
    return %c0_i32, %c0_i32_0 : i32, i32
  }
  func.func @transform_4(%arg0: i32) -> (i32, i32) {
    %c0_i32 = arith.constant 0 : i32
    %c0_i32_0 = arith.constant 0 : i32
    %c0_i32_1 = arith.constant 0 : i32
    return %c0_i32, %c0_i32_0 : i32, i32
  }
  func.func @transform_5(%arg0: i32) -> (i32, i32) {
    %c0_i32 = arith.constant 0 : i32
    %c0_i32_0 = arith.constant 0 : i32
    return %arg0, %c0_i32 : i32, i32
  }
}

</mosaic_0001>

<llo_original>
// kernel: _forward_fused.1
$region0: #{_forward_fused.1}
  #allocation0 [shape = 'u32[]', space=smem, size = 0x4, offset = 0x4, fixed_abs, tag = 'smem constant byte address 0x4 - core index']
  #allocation1 [shape = 'u32[144,128]{1,0:T(1,128)}', space=vmem, size = 0x12000, scoped, tag = 'internal scratch']
  %s0 = inlined_call_operand.vmem [shape: bf16[8,32], index: 0, kind: input, shape index: {}]
  %s1 = inlined_call_operand.vmem [shape: bf16[32,16], index: 1, kind: input, shape index: {}]
  %s2 = inlined_call_operand.vmem [shape: f32[1,16], index: 2, kind: input, shape index: {}]
  %s3 = inlined_call_operand.vmem [shape: bf16[16,128], index: 3, kind: input, shape index: {}]
  %s4 = inlined_call_operand.vmem [shape: f32[1,128], index: 4, kind: input, shape index: {}]
  %s5 = inlined_call_operand.vmem [shape: f32[8,128], index: 5, kind: output, shape index: {}]
  %s6 = sld [smem:[#allocation0]]
  $region30: #{_forward_fused.1} parent=0
    _
  %s8 = ssub.s32 1, %s6
  %s9 = scalar_select 0, %s8, %s6
  // Predicated region
  $region2: #{_forward_fused.1} parent=0 // pred_check
    _
  $region3: #{_forward_fused.1} parent=0 // pred_check_branch
    %11 = sbr.rel (0) target = $region5
  $region4: #{_forward_fused.1} parent=0 // pred_region
    _
  $region5: #{_forward_fused.1} parent=0 // pred_fallthru
    _
  // Predicated region
  $region6: #{_forward_fused.1} parent=0 // pred_check
    _
  $region7: #{_forward_fused.1} parent=0 // pred_check_branch
    %13 = sbr.rel (0) target = $region9
  $region8: #{_forward_fused.1} parent=0 // pred_region
    _
  $region9: #{_forward_fused.1} parent=0 // pred_fallthru
    _
  // Predicated region
  $region10: #{_forward_fused.1} parent=0 // pred_check
    _
  $region11: #{_forward_fused.1} parent=0 // pred_check_branch
    %15 = sbr.rel (0) target = $region13
  $region12: #{_forward_fused.1} parent=0 // pred_region
    _
  $region13: #{_forward_fused.1} parent=0 // pred_fallthru
    _
  // Predicated region
  $region14: #{_forward_fused.1} parent=0 // pred_check
    _
  $region15: #{_forward_fused.1} parent=0 // pred_check_branch
    %17 = sbr.rel (0) target = $region17
  $region16: #{_forward_fused.1} parent=0 // pred_region
    _
  $region17: #{_forward_fused.1} parent=0 // pred_fallthru
    _
  // Predicated region
  $region18: #{_forward_fused.1} parent=0 // pred_check
    _
  $region19: #{_forward_fused.1} parent=0 // pred_check_branch
    %19 = sbr.rel (0) target = $region21
  $region20: #{_forward_fused.1} parent=0 // pred_region
    _
  $region21: #{_forward_fused.1} parent=0 // pred_fallthru
    _
  %v21 = vld [vmem:[%s0] sm:$0xf]
  %v22 = vld [vmem:[%s1] sm:$0xf]
  %v23 = vld [vmem:[%s1 + $0x4] sm:$0xf]
  %v24 = vld [vmem:[%s1 + $0x8] sm:$0xf]
  %v25 = vld [vmem:[%s1 + $0xc] sm:$0xf]
  %v26 = vld [vmem:[%s2] sm:$0x1]
  %v28 = vlaneseq
  %v29 = vshrl.u32 %v28, 7
  %v30 = vsub.s32 0, %v29
  %v31 = vrot.slane %v26, %v30
  %v37 = vunpack.c.l.b16 %v22
  %v38 = vunpack.c.l.b16 %v23
  %v39 = vunpack.c.l.b16 %v24
  %v40 = vunpack.c.l.b16 %v25
  %v41 = vpack.c.b16 %v38, %v37
  %v42 = vpack.c.b16 %v40, %v39
  %vm45 = vcmask 261120
  %v47 = vsel %vm45, %v21, 0
  %49 = vmatprep.subr.bf16.mxu0 0
  %50 = vmatpush1.bf16.msra.mxu0 %v41
  %51 = vmatprep.subr.bf16.mxu0 0
  %52 = vmatpush1.bf16.msra.mxu0 %v42
  %53 = vmatprep.subr.bf16.mxu0 0
  %54 = vmatpush1.bf16.msra.mxu0 0
  %55 = vmatprep.subr.bf16.mxu0 0
  %56 = vmatpush1.bf16.msra.mxu0 0
  %57 = vmatprep.subr.bf16.mxu0 0
  %58 = vmatpush1.bf16.msra.mxu0 0
  %59 = vmatprep.subr.bf16.mxu0 0
  %60 = vmatpush1.bf16.msra.mxu0 0
  %61 = vmatprep.subr.bf16.mxu0 0
  %62 = vmatpush1.bf16.msra.mxu0 0
  %63 = vmatprep.subr.bf16.mxu0 0
  %64 = vmatpush1.bf16.msra.mxu0 0
  %65 = vmatprep.subr.bf16.mxu0 0
  %66 = vmatpush1.bf16.msra.mxu0 0
  %67 = vmatprep.subr.bf16.mxu0 0
  %68 = vmatpush1.bf16.msra.mxu0 0
  %69 = vmatprep.subr.bf16.mxu0 0
  %70 = vmatpush1.bf16.msra.mxu0 0
  %71 = vmatprep.subr.bf16.mxu0 0
  %72 = vmatpush1.bf16.msra.mxu0 0
  %73 = vmatprep.subr.bf16.mxu0 0
  %74 = vmatpush1.bf16.msra.mxu0 0
  %75 = vmatprep.subr.bf16.mxu0 0
  %76 = vmatpush1.bf16.msra.mxu0 0
  %77 = vmatprep.subr.bf16.mxu0 0
  %78 = vmatpush1.bf16.msra.mxu0 0
  %79 = vmatprep.subr.bf16.mxu0 0
  %80 = vmatpush1.bf16.msra.mxu0 0
  %81 = vmatprep.mubr.bf16.mxu0 0
  %82 = vmatmul.mubr.bf16.gmra.mrb[0].mxu0 %v47
  %v83 = vpop.f32.mrb[0].mxu0
  %v84 = vadd.f32 %v31, %v83
  %v85 = vpop.f32.mrb[0].mxu0
  %v86 = vpop.f32.mrb[0].mxu0
  %v87 = vpop.f32.mrb[0].mxu0
  %88 = vdwg.mxu0
  %v89 = vmax.f32 %v84, 0.0
  %v90 = vpack.c.bf16 %v89, %v89
  %v91 = vld [vmem:[%s3] sm:$0xf]
  %v92 = vld [vmem:[%s3 + $0x4] sm:$0xf]
  %v93 = vld [vmem:[%s4] sm:$0x1]
  %v95 = vlaneseq
  %v96 = vshrl.u32 %v95, 7
  %v97 = vsub.s32 0, %v96
  %v98 = vrot.slane %v93, %v97
  %v102 = vunpack.c.l.b16 %v91
  %v103 = vunpack.c.l.b16 %v92
  %v104 = vpack.c.b16 %v103, %v102
  %vm106 = vcmask 130048
  %v108 = vsel %vm106, %v90, 0
  %110 = vmatprep.subr.bf16.mxu0 0
  %111 = vmatpush1.bf16.msra.mxu0 %v104
  %112 = vmatprep.subr.bf16.mxu0 0
  %113 = vmatpush1.bf16.msra.mxu0 0
  %114 = vmatprep.subr.bf16.mxu0 0
  %115 = vmatpush1.bf16.msra.mxu0 0
  %116 = vmatprep.subr.bf16.mxu0 0
  %117 = vmatpush1.bf16.msra.mxu0 0
  %118 = vmatprep.subr.bf16.mxu0 0
  %119 = vmatpush1.bf16.msra.mxu0 0
  %120 = vmatprep.subr.bf16.mxu0 0
  %121 = vmatpush1.bf16.msra.mxu0 0
  %122 = vmatprep.subr.bf16.mxu0 0
  %123 = vmatpush1.bf16.msra.mxu0 0
  %124 = vmatprep.subr.bf16.mxu0 0
  %125 = vmatpush1.bf16.msra.mxu0 0
  %126 = vmatprep.subr.bf16.mxu0 0
  %127 = vmatpush1.bf16.msra.mxu0 0
  %128 = vmatprep.subr.bf16.mxu0 0
  %129 = vmatpush1.bf16.msra.mxu0 0
  %130 = vmatprep.subr.bf16.mxu0 0
  %131 = vmatpush1.bf16.msra.mxu0 0
  %132 = vmatprep.subr.bf16.mxu0 0
  %133 = vmatpush1.bf16.msra.mxu0 0
  %134 = vmatprep.subr.bf16.mxu0 0
  %135 = vmatpush1.bf16.msra.mxu0 0
  %136 = vmatprep.subr.bf16.mxu0 0
  %137 = vmatpush1.bf16.msra.mxu0 0
  %138 = vmatprep.subr.bf16.mxu0 0
  %139 = vmatpush1.bf16.msra.mxu0 0
  %140 = vmatprep.subr.bf16.mxu0 0
  %141 = vmatpush1.bf16.msra.mxu0 0
  %142 = vmatprep.mubr.bf16.mxu0 0
  %143 = vmatmul.mubr.bf16.gmra.mrb[0].mxu0 %v108
  %v144 = vpop.f32.mrb[0].mxu0
  %v145 = vadd.f32 %v98, %v144
  %v146 = vpop.f32.mrb[0].mxu0
  %v147 = vpop.f32.mrb[0].mxu0
  %v148 = vpop.f32.mrb[0].mxu0
  %149 = vdwg.mxu0
  %v150 = vlaneseq
  %v151 = vand.u32 %v150, 127
  %vm152 = vcmask 64512
  %v153 = vsel %vm152, %v145, -inf
  %154 = vmax.xlane.f32.xlu0 %v153
  %v155 = vpop.xlane.xlu0 %154
  %vm156 = vcmp.ge.s32.totalorder %v151, 0
  %vm157 = vcmp.lt.s32.totalorder %v151, 8
  %vm158 = vmand %vm156, %vm157
  %v159 = vsel %vm158, %v155, 0.0
  %vm160 = vcmask 130112
  %v161 = vsel %vm160, %v145, -inf
  %162 = vmax.xlane.f32.xlu0 %v161
  %v163 = vpop.xlane.xlu0 %162
  %vm164 = vcmp.ge.s32.totalorder %v151, 8
  %vm165 = vcmp.lt.s32.totalorder %v151, 16
  %vm166 = vmand %vm164, %vm165
  %v167 = vsel %vm166, %v163, %v159
  %vm168 = vcmask 195712
  %v169 = vsel %vm168, %v145, -inf
  %170 = vmax.xlane.f32.xlu0 %v169
  %v171 = vpop.xlane.xlu0 %170
  %vm172 = vcmp.ge.s32.totalorder %v151, 16
  %vm173 = vcmp.lt.s32.totalorder %v151, 24
  %vm174 = vmand %vm172, %vm173
  %v175 = vsel %vm174, %v171, %v167
  %v176 = vsub.f32 %v145, %v175
  %v177 = vmul.f32 %v176, 1.442695
  %v178 = vpow.pop %v177
  %v179 = vsel %vm152, %v178, 0.0
  %180 = vadd.xlane.f32.xlu0 %v179
  %v181 = vpop.xlane.xlu0 %180
  %v182 = vsel %vm158, %v181, 1.0
  %184 = vrot.lane.b32.xlu0 %v178, 120
  %v185 = vpop.permute.xlu0 %184
  %v187 = vsel %vm152, %v185, 0.0
  %188 = vadd.xlane.f32.xlu0 %v187
  %v189 = vpop.xlane.xlu0 %188
  %v190 = vsel %vm166, %v189, %v182
  %191 = vrot.lane.b32.xlu0 %v178, 112
  %v192 = vpop.permute.xlu0 %191
  %v194 = vsel %vm152, %v192, 0.0
  %195 = vadd.xlane.f32.xlu0 %v194
  %v196 = vpop.xlane.xlu0 %195
  %v197 = vsel %vm174, %v196, %v190
  %v198 = vrcp.pop %v197
  %v199 = vmul.f32 %v178, %v198
  %200 = vst [vmem:[%s5] sm:$0xff] %v199
  // Predicated region
  $region22: #{_forward_fused.1} parent=0 // pred_check
    _
  $region23: #{_forward_fused.1} parent=0 // pred_check_branch
    %202 = sbr.rel (0) target = $region25
  $region24: #{_forward_fused.1} parent=0 // pred_region
    _
  $region25: #{_forward_fused.1} parent=0 // pred_fallthru
    _
  // Predicated region
  $region26: #{_forward_fused.1} parent=0 // pred_check
    _
  $region27: #{_forward_fused.1} parent=0 // pred_check_branch
    %204 = sbr.rel (0) target = $region29
  $region28: #{_forward_fused.1} parent=0 // pred_region
    _
  $region29: #{_forward_fused.1} parent=0 // pred_fallthru
    _

</llo_original>
